<compile_context>
chip_gen: v6e
topology: v6e:2x2x1
jax: 0.10.0
libtpu: 0.0.40
codegen_flags: <defaults>
</compile_context>

<pallas_src>
import functools

import jax
import jax.numpy as jnp
from jax.experimental import pallas as pl
from jax.experimental.pallas import tpu as pltpu


# ----------------------------- Pallas kernel ------------------------------ #
def _dw_conv_kernel(w_ref, x_ref, o_ref, xp_ref, *,
                    K, stride, dilation, pad, C_TILE, H, W, Ho, Wo):
    """Depthwise conv for one (batch, channel-block) tile, vectorized over the
    whole channel block.

    w_ref  : VMEM (C_TILE, K*K) f32    per-channel filter taps for this block
    x_ref  : VMEM (1, C_TILE, H, W)    input tile (NCHW block)
    o_ref  : VMEM (1, C_TILE, Ho, Wo)  output tile
    xp_ref : VMEM (C_TILE, Hp, Wp) f32 zero-padded scratch
    """
    Hp = H + 2 * pad
    Wp = W + 2 * pad
    Hs = (Ho - 1) * stride + 1          # contiguous extent covering strided rows
    Ws = (Wo - 1) * stride + 1

    # ---- "same" padding: zero only the border, one interior copy ---------
    # (input converted to f32 exactly once; the MAC loop never re-converts)
    x = x_ref[0].astype(jnp.float32)                         # (C_TILE, H, W)
    if pad:
        xp_ref[:, :pad, :] = jnp.zeros((C_TILE, pad, Wp), jnp.float32)
        xp_ref[:, pad + H:, :] = jnp.zeros((C_TILE, pad, Wp), jnp.float32)
        xp_ref[:, pad:pad + H, :pad] = jnp.zeros((C_TILE, H, pad), jnp.float32)
        xp_ref[:, pad:pad + H, pad + W:] = jnp.zeros((C_TILE, H, pad), jnp.float32)
    xp_ref[:, pad:pad + H, pad:pad + W] = x

    w = w_ref[...]                                           # (C_TILE, K*K) f32
    acc = jnp.zeros((C_TILE, Ho, Wo), jnp.float32)

    # Lane (W) shifts hoisted out of the tap loop: K lane-offset loads per
    # block (instead of K*K), stride-subsampling in W done once per kj.
    for kj in range(K):
        w0 = kj * dilation
        xw = xp_ref[:, :, w0:w0 + Ws]                        # (C_TILE, Hp, Ws)
        if stride > 1:
            xw = jax.lax.slice(xw, (0, 0, 0), (C_TILE, Hp, Ws),
                               (1, 1, stride))               # (C_TILE, Hp, Wo)
        for ki in range(K):                                  # cheap sublane windows
            h0 = ki * dilation
            if stride > 1:
                win = jax.lax.slice(xw, (0, h0, 0), (C_TILE, h0 + Hs, Wo),
                                    (1, stride, 1))          # (C_TILE, Ho, Wo)
            else:
                win = xw[:, h0:h0 + Ho, :]                   # (C_TILE, Ho, Wo)
            tap = w[:, ki * K + kj].reshape(C_TILE, 1, 1)    # per-channel tap
            acc = acc + win * tap                            # one VPU MAC / tap
    o_ref[0] = acc.astype(o_ref.dtype)                       # single bulk store


# --------------------------- VMEM / tiling policy -------------------------- #
def _vmem_limit_bytes():
    """Generation-aware scoped-VMEM request (v5e/v6e: 128 MiB physical,
    v7x: 64 MiB).  Stay well under physical for pipeline headroom."""
    try:
        phys = int(pltpu.get_tpu_info().vmem_capacity_bytes)
    except Exception:                       # older runtimes / no query support
        phys = 64 << 20                     # most conservative (v7x)
    return min(phys // 2, 48 << 20)


def _pick_c_tile(C, H, W, Hp, Wp, Ho, Wo, K2, in_itemsize, budget):
    """Largest layout-legal channel tile whose per-step VMEM footprint
    (double-buffered in/out blocks + f32 scratch + accumulator) fits budget."""
    def legal(ct):
        # Weight block is (ct, K*K): its second-minor dim must be the full C
        # or a multiple of 8 (the (8, 128) BlockSpec rule).
        return C % ct == 0 and (ct == C or ct % 8 == 0)

    for ct in range(C, 0, -1):
        if not legal(ct):
            continue
        per_step = 2 * ct * (H * W + Ho * Wo) * in_itemsize   # dbl-buffered blocks
        per_step += ct * Hp * Wp * 4                          # f32 padded scratch
        per_step += ct * Ho * Wo * 4                          # f32 accumulator
        per_step += 2 * ct * K2 * 4                           # tap block (tiny)
        if per_step <= budget:
            return ct
    # Nothing fits the budget: smallest legal tile (still correct, may spill).
    for ct in range(1, C + 1):
        if legal(ct):
            return ct
    return C


# ------------------------------ JAX wrapper -------------------------------- #
def dynamic_separable_conv2d(x_nchw, weight, kernel_size, *, stride=1,
                             dilation=1, channels_per_group=1):
    """Forward pass equivalent of DynamicSeparableConv2d (depthwise case).

    x_nchw : (N, C, H, W)  with C <= max_in_channels, f32 or bf16
    weight : (max_in_channels, channels_per_group, Kmax, Kmax)
    """
    # TODO(synk): only the depthwise case (channels_per_group == 1) is
    # implemented; grouped cpg > 1 would need per-group channel gathering.
    assert channels_per_group == 1

    N, C, H, W = x_nchw.shape
    Kmax = weight.shape[-1]
    K = int(kernel_size)
    assert K % 2 == 1, "even kernel sizes give asymmetric center crop / padding"

    # get_active_filter: centered sub-filter of the max-kernel weight
    # (KERNEL_TRANSFORM_MODE is None -> no linear kernel transform).
    start = Kmax // 2 - K // 2
    filt = weight[:C, 0, start:start + K, start:start + K]        # (C, K, K)
    w_flat = filt.reshape(C, K * K).astype(jnp.float32)

    # "same" padding = K // 2 (intentionally NOT scaled by dilation, as in the
    # PyTorch module's get_same_padding).
    pad = K // 2
    Hp, Wp = H + 2 * pad, W + 2 * pad
    Ho = (Hp - dilation * (K - 1) - 1) // stride + 1
    Wo = (Wp - dilation * (K - 1) - 1) // stride + 1

    vmem_limit = _vmem_limit_bytes()
    budget = int(vmem_limit * 0.6)
    C_TILE = _pick_c_tile(C, H, W, Hp, Wp, Ho, Wo, K * K,
                          jnp.dtype(x_nchw.dtype).itemsize, budget)

    kernel = functools.partial(
        _dw_conv_kernel, K=K, stride=stride, dilation=dilation, pad=pad,
        C_TILE=C_TILE, H=H, W=W, Ho=Ho, Wo=Wo)

    grid = (N, C // C_TILE)
    in_specs = [
        # tiny per-block tap tile (VMEM); avoids 2-D SMEM padding blow-up
        pl.BlockSpec((C_TILE, K * K), lambda n, cb: (cb, 0)),
        # NCHW block: last two dims equal full array dims (H sublanes, W lanes)
        pl.BlockSpec((1, C_TILE, H, W), lambda n, cb: (n, cb, 0, 0)),
    ]
    out_specs = pl.BlockSpec((1, C_TILE, Ho, Wo), lambda n, cb: (n, cb, 0, 0))
    scratch_shapes = [pltpu.VMEM((C_TILE, Hp, Wp), jnp.float32)]

    def build(dim_sems):
        return pl.pallas_call(
            kernel,
            out_shape=jax.ShapeDtypeStruct((N, C, Ho, Wo), x_nchw.dtype),
            grid=grid,
            in_specs=in_specs,
            out_specs=out_specs,
            scratch_shapes=scratch_shapes,
            compiler_params=pltpu.CompilerParams(
                dimension_semantics=dim_sems,
                vmem_limit_bytes=vmem_limit),
        )

    parallel = getattr(pltpu, "PARALLEL", "parallel")
    core_parallel = getattr(pltpu, "CORE_PARALLEL", None)
    sem_options = []
    if core_parallel is not None:
        # v7x: shard a grid axis with trip count >= 2 across both TensorCores.
        if N >= 2:
            sem_options.append((core_parallel, parallel))
        elif C // C_TILE >= 2:
            sem_options.append((parallel, core_parallel))
    sem_options.append((parallel, parallel))

    last_err = None
    for dim_sems in sem_options:
        try:
            out = build(dim_sems)(w_flat, x_nchw)
            return jax.block_until_ready(out)
        except Exception as e:          # single-core gens / older runtimes
            last_err = e
    raise last_err


# ----------------------------- reference impl ------------------------------ #
def _reference(x_nchw, weight, kernel_size, *, stride=1, dilation=1):
    C = x_nchw.shape[1]
    Kmax = weight.shape[-1]
    start = Kmax // 2 - kernel_size // 2
    end = start + kernel_size
    filt = weight[:C, :, start:end, start:end]        # (C, 1, K, K)
    pad = kernel_size // 2
    return jax.lax.conv_general_dilated(
        x_nchw, filt,
        window_strides=(stride, stride),
        padding=((pad, pad), (pad, pad)),
        rhs_dilation=(dilation, dilation),
        dimension_numbers=("NCHW", "OIHW", "NCHW"),
        feature_group_count=C,
    )


if __name__ == "__main__":
    # Module config (synthetic, deterministic):
    max_in_channels = 8
    kernel_size_list = [3, 5, 7]
    Kmax = max(kernel_size_list)
    stride, dilation, channels_per_group = 1, 1, 1

    key = jax.random.PRNGKey(0)
    kx, kw = jax.random.split(key)

    # Input: N=2, C=4 (<= max_in_channels), H=W=16, NCHW like PyTorch.
    x = jax.random.normal(kx, (2, 4, 16, 16), dtype=jnp.float32)
    # nn.Conv2d weight: (max_in_channels, channels_per_group, Kmax, Kmax)
    weight = (jax.random.normal(
        kw, (max_in_channels, channels_per_group, Kmax, Kmax),
        dtype=jnp.float32) * 0.1)

    # Exercise the dynamic kernel-size selection (the point of the module).
    for active_kernel_size in kernel_size_list:
        y = dynamic_separable_conv2d(
            x, weight, active_kernel_size,
            stride=stride, dilation=dilation,
            channels_per_group=channels_per_group)
        y = jax.block_until_ready(y)

        y_ref = _reference(x, weight, active_kernel_size,
                           stride=stride, dilation=dilation)
        assert y.shape == y_ref.shape, (y.shape, y_ref.shape)
        assert jnp.allclose(y, y_ref, atol=1e-5, rtol=1e-5), (
            f"mismatch for kernel_size={active_kernel_size}")

    print("KERNEL_OK")
</pallas_src>

<mosaic_0001>
module attributes {stable_mosaic.version = 11 : i64} {
  func.func @_dw_conv_kernel(%arg0: i32, %arg1: i32, %arg2: memref<4x9xf32, #tpu.memory_space<vmem>>, %arg3: memref<1x4x16x16xf32, #tpu.memory_space<vmem>>, %arg4: memref<1x4x16x16xf32, #tpu.memory_space<vmem>>, %arg5: memref<4x18x18xf32, #tpu.memory_space<vmem>>) attributes {dimension_semantics = [#tpu.dimension_semantics<core_parallel>, #tpu.dimension_semantics<parallel>], iteration_bounds = array<i64: 2, 1>, scalar_prefetch = 0 : i64, scratch_operands = 1 : i64, tpu.core_type = #tpu.core_type<tc>, window_params = [{transform_indices = @transform_0, window_bounds = array<i64: 4, 9>}, {transform_indices = @transform_1, window_bounds = array<i64: 1, 4, 16, 16>}, {transform_indices = @transform_2, window_bounds = array<i64: 1, 4, 16, 16>}]} {
    %c0 = arith.constant 0 : index
    %c0_0 = arith.constant 0 : index
    %c0_1 = arith.constant 0 : index
    %c0_2 = arith.constant 0 : index
    %0 = vector.load %arg3[%c0, %c0_0, %c0_1, %c0_2] : memref<1x4x16x16xf32, #tpu.memory_space<vmem>>, vector<1x4x16x16xf32>
    %1 = vector.shape_cast %0 : vector<1x4x16x16xf32> to vector<4x16x16xf32>
    %cst = arith.constant 0.000000e+00 : f32
    %2 = vector.broadcast %cst : f32 to vector<4x1x18xf32>
    %c0_3 = arith.constant 0 : index
    %c0_4 = arith.constant 0 : index
    %c0_5 = arith.constant 0 : index
    %3 = vector.load %arg5[%c0_3, %c0_4, %c0_5] : memref<4x18x18xf32, #tpu.memory_space<vmem>>, vector<4x1x18xf32>
    tpu.vector_store %arg5[%c0_3, %c0_4, %c0_5], %2 {strides = array<i32>} : memref<4x18x18xf32, #tpu.memory_space<vmem>>, vector<4x1x18xf32>,
    %cst_6 = arith.constant 0.000000e+00 : f32
    %4 = vector.broadcast %cst_6 : f32 to vector<4x1x18xf32>
    %c0_7 = arith.constant 0 : index
    %c17 = arith.constant 17 : index
    %c0_8 = arith.constant 0 : index
    %5 = vector.load %arg5[%c0_7, %c17, %c0_8] : memref<4x18x18xf32, #tpu.memory_space<vmem>>, vector<4x1x18xf32>
    tpu.vector_store %arg5[%c0_7, %c17, %c0_8], %4 {strides = array<i32>} : memref<4x18x18xf32, #tpu.memory_space<vmem>>, vector<4x1x18xf32>,
    %cst_9 = arith.constant 0.000000e+00 : f32
    %6 = vector.broadcast %cst_9 : f32 to vector<4x16x1xf32>
    %c0_10 = arith.constant 0 : index
    %c1 = arith.constant 1 : index
    %c0_11 = arith.constant 0 : index
    %7 = vector.load %arg5[%c0_10, %c1, %c0_11] : memref<4x18x18xf32, #tpu.memory_space<vmem>>, vector<4x16x1xf32>
    tpu.vector_store %arg5[%c0_10, %c1, %c0_11], %6 {strides = array<i32>} : memref<4x18x18xf32, #tpu.memory_space<vmem>>, vector<4x16x1xf32>,
    %cst_12 = arith.constant 0.000000e+00 : f32
    %8 = vector.broadcast %cst_12 : f32 to vector<4x16x1xf32>
    %c0_13 = arith.constant 0 : index
    %c1_14 = arith.constant 1 : index
    %c17_15 = arith.constant 17 : index
    %9 = vector.load %arg5[%c0_13, %c1_14, %c17_15] : memref<4x18x18xf32, #tpu.memory_space<vmem>>, vector<4x16x1xf32>
    tpu.vector_store %arg5[%c0_13, %c1_14, %c17_15], %8 {strides = array<i32>} : memref<4x18x18xf32, #tpu.memory_space<vmem>>, vector<4x16x1xf32>,
    %c0_16 = arith.constant 0 : index
    %c1_17 = arith.constant 1 : index
    %c1_18 = arith.constant 1 : index
    %10 = vector.load %arg5[%c0_16, %c1_17, %c1_18] : memref<4x18x18xf32, #tpu.memory_space<vmem>>, vector<4x16x16xf32>
    tpu.vector_store %arg5[%c0_16, %c1_17, %c1_18], %1 {strides = array<i32>} : memref<4x18x18xf32, #tpu.memory_space<vmem>>, vector<4x16x16xf32>,
    %c0_19 = arith.constant 0 : index
    %c0_20 = arith.constant 0 : index
    %11 = vector.load %arg2[%c0_19, %c0_20] : memref<4x9xf32, #tpu.memory_space<vmem>>, vector<4x9xf32>
    %cst_21 = arith.constant 0.000000e+00 : f32
    %12 = vector.broadcast %cst_21 : f32 to vector<4x16x16xf32>
    %c0_22 = arith.constant 0 : index
    %c0_23 = arith.constant 0 : index
    %c0_24 = arith.constant 0 : index
    %13 = vector.load %arg5[%c0_22, %c0_23, %c0_24] : memref<4x18x18xf32, #tpu.memory_space<vmem>>, vector<4x18x16xf32>
    %14 = vector.extract_strided_slice %13 {offsets = [0, 0, 0], sizes = [4, 16, 16], strides = [1, 1, 1]} : vector<4x18x16xf32> to vector<4x16x16xf32>
    %15 = vector.extract_strided_slice %11 {offsets = [0, 0], sizes = [4, 1], strides = [1, 1]} : vector<4x9xf32> to vector<4x1xf32>
    %16 = vector.shape_cast %15 : vector<4x1xf32> to vector<4xf32>
    %17 = vector.shape_cast %16 : vector<4xf32> to vector<4x1x1xf32>
    %18 = vector.broadcast %17 : vector<4x1x1xf32> to vector<4x16x16xf32>
    %19 = arith.mulf %14, %18 : vector<4x16x16xf32>
    %20 = arith.addf %12, %19 : vector<4x16x16xf32>
    %21 = vector.extract_strided_slice %13 {offsets = [0, 1, 0], sizes = [4, 16, 16], strides = [1, 1, 1]} : vector<4x18x16xf32> to vector<4x16x16xf32>
    %22 = vector.extract_strided_slice %11 {offsets = [0, 3], sizes = [4, 1], strides = [1, 1]} : vector<4x9xf32> to vector<4x1xf32>
    %23 = vector.shape_cast %22 : vector<4x1xf32> to vector<4xf32>
    %24 = vector.shape_cast %23 : vector<4xf32> to vector<4x1x1xf32>
    %25 = vector.broadcast %24 : vector<4x1x1xf32> to vector<4x16x16xf32>
    %26 = arith.mulf %21, %25 : vector<4x16x16xf32>
    %27 = arith.addf %20, %26 : vector<4x16x16xf32>
    %28 = vector.extract_strided_slice %13 {offsets = [0, 2, 0], sizes = [4, 16, 16], strides = [1, 1, 1]} : vector<4x18x16xf32> to vector<4x16x16xf32>
    %29 = vector.extract_strided_slice %11 {offsets = [0, 6], sizes = [4, 1], strides = [1, 1]} : vector<4x9xf32> to vector<4x1xf32>
    %30 = vector.shape_cast %29 : vector<4x1xf32> to vector<4xf32>
    %31 = vector.shape_cast %30 : vector<4xf32> to vector<4x1x1xf32>
    %32 = vector.broadcast %31 : vector<4x1x1xf32> to vector<4x16x16xf32>
    %33 = arith.mulf %28, %32 : vector<4x16x16xf32>
    %34 = arith.addf %27, %33 : vector<4x16x16xf32>
    %c0_25 = arith.constant 0 : index
    %c0_26 = arith.constant 0 : index
    %c1_27 = arith.constant 1 : index
    %35 = vector.load %arg5[%c0_25, %c0_26, %c1_27] : memref<4x18x18xf32, #tpu.memory_space<vmem>>, vector<4x18x16xf32>
    %36 = vector.extract_strided_slice %35 {offsets = [0, 0, 0], sizes = [4, 16, 16], strides = [1, 1, 1]} : vector<4x18x16xf32> to vector<4x16x16xf32>
    %37 = vector.extract_strided_slice %11 {offsets = [0, 1], sizes = [4, 1], strides = [1, 1]} : vector<4x9xf32> to vector<4x1xf32>
    %38 = vector.shape_cast %37 : vector<4x1xf32> to vector<4xf32>
    %39 = vector.shape_cast %38 : vector<4xf32> to vector<4x1x1xf32>
    %40 = vector.broadcast %39 : vector<4x1x1xf32> to vector<4x16x16xf32>
    %41 = arith.mulf %36, %40 : vector<4x16x16xf32>
    %42 = arith.addf %34, %41 : vector<4x16x16xf32>
    %43 = vector.extract_strided_slice %35 {offsets = [0, 1, 0], sizes = [4, 16, 16], strides = [1, 1, 1]} : vector<4x18x16xf32> to vector<4x16x16xf32>
    %44 = vector.extract_strided_slice %11 {offsets = [0, 4], sizes = [4, 1], strides = [1, 1]} : vector<4x9xf32> to vector<4x1xf32>
    %45 = vector.shape_cast %44 : vector<4x1xf32> to vector<4xf32>
    %46 = vector.shape_cast %45 : vector<4xf32> to vector<4x1x1xf32>
    %47 = vector.broadcast %46 : vector<4x1x1xf32> to vector<4x16x16xf32>
    %48 = arith.mulf %43, %47 : vector<4x16x16xf32>
    %49 = arith.addf %42, %48 : vector<4x16x16xf32>
    %50 = vector.extract_strided_slice %35 {offsets = [0, 2, 0], sizes = [4, 16, 16], strides = [1, 1, 1]} : vector<4x18x16xf32> to vector<4x16x16xf32>
    %51 = vector.extract_strided_slice %11 {offsets = [0, 7], sizes = [4, 1], strides = [1, 1]} : vector<4x9xf32> to vector<4x1xf32>
    %52 = vector.shape_cast %51 : vector<4x1xf32> to vector<4xf32>
    %53 = vector.shape_cast %52 : vector<4xf32> to vector<4x1x1xf32>
    %54 = vector.broadcast %53 : vector<4x1x1xf32> to vector<4x16x16xf32>
    %55 = arith.mulf %50, %54 : vector<4x16x16xf32>
    %56 = arith.addf %49, %55 : vector<4x16x16xf32>
    %c0_28 = arith.constant 0 : index
    %c0_29 = arith.constant 0 : index
    %c2 = arith.constant 2 : index
    %57 = vector.load %arg5[%c0_28, %c0_29, %c2] : memref<4x18x18xf32, #tpu.memory_space<vmem>>, vector<4x18x16xf32>
    %58 = vector.extract_strided_slice %57 {offsets = [0, 0, 0], sizes = [4, 16, 16], strides = [1, 1, 1]} : vector<4x18x16xf32> to vector<4x16x16xf32>
    %59 = vector.extract_strided_slice %11 {offsets = [0, 2], sizes = [4, 1], strides = [1, 1]} : vector<4x9xf32> to vector<4x1xf32>
    %60 = vector.shape_cast %59 : vector<4x1xf32> to vector<4xf32>
    %61 = vector.shape_cast %60 : vector<4xf32> to vector<4x1x1xf32>
    %62 = vector.broadcast %61 : vector<4x1x1xf32> to vector<4x16x16xf32>
    %63 = arith.mulf %58, %62 : vector<4x16x16xf32>
    %64 = arith.addf %56, %63 : vector<4x16x16xf32>
    %65 = vector.extract_strided_slice %57 {offsets = [0, 1, 0], sizes = [4, 16, 16], strides = [1, 1, 1]} : vector<4x18x16xf32> to vector<4x16x16xf32>
    %66 = vector.extract_strided_slice %11 {offsets = [0, 5], sizes = [4, 1], strides = [1, 1]} : vector<4x9xf32> to vector<4x1xf32>
    %67 = vector.shape_cast %66 : vector<4x1xf32> to vector<4xf32>
    %68 = vector.shape_cast %67 : vector<4xf32> to vector<4x1x1xf32>
    %69 = vector.broadcast %68 : vector<4x1x1xf32> to vector<4x16x16xf32>
    %70 = arith.mulf %65, %69 : vector<4x16x16xf32>
    %71 = arith.addf %64, %70 : vector<4x16x16xf32>
    %72 = vector.extract_strided_slice %57 {offsets = [0, 2, 0], sizes = [4, 16, 16], strides = [1, 1, 1]} : vector<4x18x16xf32> to vector<4x16x16xf32>
    %73 = vector.extract_strided_slice %11 {offsets = [0, 8], sizes = [4, 1], strides = [1, 1]} : vector<4x9xf32> to vector<4x1xf32>
    %74 = vector.shape_cast %73 : vector<4x1xf32> to vector<4xf32>
    %75 = vector.shape_cast %74 : vector<4xf32> to vector<4x1x1xf32>
    %76 = vector.broadcast %75 : vector<4x1x1xf32> to vector<4x16x16xf32>
    %77 = arith.mulf %72, %76 : vector<4x16x16xf32>
    %78 = arith.addf %71, %77 : vector<4x16x16xf32>
    %c0_30 = arith.constant 0 : index
    %c0_31 = arith.constant 0 : index
    %c0_32 = arith.constant 0 : index
    %c0_33 = arith.constant 0 : index
    %79 = vector.load %arg4[%c0_30, %c0_31, %c0_32, %c0_33] : memref<1x4x16x16xf32, #tpu.memory_space<vmem>>, vector<1x4x16x16xf32>
    %80 = vector.shape_cast %79 : vector<1x4x16x16xf32> to vector<4x16x16xf32>
    %81 = vector.shape_cast %78 : vector<4x16x16xf32> to vector<1x4x16x16xf32>
    tpu.vector_store %arg4[%c0_30, %c0_31, %c0_32, %c0_33], %81 {strides = array<i32>} : memref<1x4x16x16xf32, #tpu.memory_space<vmem>>, vector<1x4x16x16xf32>,
    return
  }
  func.func @transform_0(%arg0: i32, %arg1: i32) -> (i32, i32) {
    %c0_i32 = arith.constant 0 : i32
    %c0_i32_0 = arith.constant 0 : i32
    return %arg1, %c0_i32 : i32, i32
  }
  func.func @transform_1(%arg0: i32, %arg1: i32) -> (i32, i32, i32, i32) {
    %c0_i32 = arith.constant 0 : i32
    %c0_i32_0 = arith.constant 0 : i32
    %c0_i32_1 = arith.constant 0 : i32
    return %arg0, %arg1, %c0_i32, %c0_i32_0 : i32, i32, i32, i32
  }
  func.func @transform_2(%arg0: i32, %arg1: i32) -> (i32, i32, i32, i32) {
    %c0_i32 = arith.constant 0 : i32
    %c0_i32_0 = arith.constant 0 : i32
    %c0_i32_1 = arith.constant 0 : i32
    return %arg0, %arg1, %c0_i32, %c0_i32_0 : i32, i32, i32, i32
  }
}

module attributes {stable_mosaic.version = 11 : i64} {
  func.func @_dw_conv_kernel(%arg0: i32, %arg1: i32, %arg2: memref<4x9xf32, #tpu.memory_space<vmem>>, %arg3: memref<1x4x16x16xf32, #tpu.memory_space<vmem>>, %arg4: memref<1x4x16x16xf32, #tpu.memory_space<vmem>>, %arg5: memref<4x18x18xf32, #tpu.memory_space<vmem>>) attributes {dimension_semantics = [#tpu.dimension_semantics<parallel>, #tpu.dimension_semantics<parallel>], iteration_bounds = array<i64: 2, 1>, scalar_prefetch = 0 : i64, scratch_operands = 1 : i64, tpu.core_type = #tpu.core_type<tc>, window_params = [{transform_indices = @transform_0, window_bounds = array<i64: 4, 9>}, {transform_indices = @transform_1, window_bounds = array<i64: 1, 4, 16, 16>}, {transform_indices = @transform_2, window_bounds = array<i64: 1, 4, 16, 16>}]} {
    %c0 = arith.constant 0 : index
    %c0_0 = arith.constant 0 : index
    %c0_1 = arith.constant 0 : index
    %c0_2 = arith.constant 0 : index
    %0 = vector.load %arg3[%c0, %c0_0, %c0_1, %c0_2] : memref<1x4x16x16xf32, #tpu.memory_space<vmem>>, vector<1x4x16x16xf32>
    %1 = vector.shape_cast %0 : vector<1x4x16x16xf32> to vector<4x16x16xf32>
    %cst = arith.constant 0.000000e+00 : f32
    %2 = vector.broadcast %cst : f32 to vector<4x1x18xf32>
    %c0_3 = arith.constant 0 : index
    %c0_4 = arith.constant 0 : index
    %c0_5 = arith.constant 0 : index
    %3 = vector.load %arg5[%c0_3, %c0_4, %c0_5] : memref<4x18x18xf32, #tpu.memory_space<vmem>>, vector<4x1x18xf32>
    tpu.vector_store %arg5[%c0_3, %c0_4, %c0_5], %2 {strides = array<i32>} : memref<4x18x18xf32, #tpu.memory_space<vmem>>, vector<4x1x18xf32>,
    %cst_6 = arith.constant 0.000000e+00 : f32
    %4 = vector.broadcast %cst_6 : f32 to vector<4x1x18xf32>
    %c0_7 = arith.constant 0 : index
    %c17 = arith.constant 17 : index
    %c0_8 = arith.constant 0 : index
    %5 = vector.load %arg5[%c0_7, %c17, %c0_8] : memref<4x18x18xf32, #tpu.memory_space<vmem>>, vector<4x1x18xf32>
    tpu.vector_store %arg5[%c0_7, %c17, %c0_8], %4 {strides = array<i32>} : memref<4x18x18xf32, #tpu.memory_space<vmem>>, vector<4x1x18xf32>,
    %cst_9 = arith.constant 0.000000e+00 : f32
    %6 = vector.broadcast %cst_9 : f32 to vector<4x16x1xf32>
    %c0_10 = arith.constant 0 : index
    %c1 = arith.constant 1 : index
    %c0_11 = arith.constant 0 : index
    %7 = vector.load %arg5[%c0_10, %c1, %c0_11] : memref<4x18x18xf32, #tpu.memory_space<vmem>>, vector<4x16x1xf32>
    tpu.vector_store %arg5[%c0_10, %c1, %c0_11], %6 {strides = array<i32>} : memref<4x18x18xf32, #tpu.memory_space<vmem>>, vector<4x16x1xf32>,
    %cst_12 = arith.constant 0.000000e+00 : f32
    %8 = vector.broadcast %cst_12 : f32 to vector<4x16x1xf32>
    %c0_13 = arith.constant 0 : index
    %c1_14 = arith.constant 1 : index
    %c17_15 = arith.constant 17 : index
    %9 = vector.load %arg5[%c0_13, %c1_14, %c17_15] : memref<4x18x18xf32, #tpu.memory_space<vmem>>, vector<4x16x1xf32>
    tpu.vector_store %arg5[%c0_13, %c1_14, %c17_15], %8 {strides = array<i32>} : memref<4x18x18xf32, #tpu.memory_space<vmem>>, vector<4x16x1xf32>,
    %c0_16 = arith.constant 0 : index
    %c1_17 = arith.constant 1 : index
    %c1_18 = arith.constant 1 : index
    %10 = vector.load %arg5[%c0_16, %c1_17, %c1_18] : memref<4x18x18xf32, #tpu.memory_space<vmem>>, vector<4x16x16xf32>
    tpu.vector_store %arg5[%c0_16, %c1_17, %c1_18], %1 {strides = array<i32>} : memref<4x18x18xf32, #tpu.memory_space<vmem>>, vector<4x16x16xf32>,
    %c0_19 = arith.constant 0 : index
    %c0_20 = arith.constant 0 : index
    %11 = vector.load %arg2[%c0_19, %c0_20] : memref<4x9xf32, #tpu.memory_space<vmem>>, vector<4x9xf32>
    %cst_21 = arith.constant 0.000000e+00 : f32
    %12 = vector.broadcast %cst_21 : f32 to vector<4x16x16xf32>
    %c0_22 = arith.constant 0 : index
    %c0_23 = arith.constant 0 : index
    %c0_24 = arith.constant 0 : index
    %13 = vector.load %arg5[%c0_22, %c0_23, %c0_24] : memref<4x18x18xf32, #tpu.memory_space<vmem>>, vector<4x18x16xf32>
    %14 = vector.extract_strided_slice %13 {offsets = [0, 0, 0], sizes = [4, 16, 16], strides = [1, 1, 1]} : vector<4x18x16xf32> to vector<4x16x16xf32>
    %15 = vector.extract_strided_slice %11 {offsets = [0, 0], sizes = [4, 1], strides = [1, 1]} : vector<4x9xf32> to vector<4x1xf32>
    %16 = vector.shape_cast %15 : vector<4x1xf32> to vector<4xf32>
    %17 = vector.shape_cast %16 : vector<4xf32> to vector<4x1x1xf32>
    %18 = vector.broadcast %17 : vector<4x1x1xf32> to vector<4x16x16xf32>
    %19 = arith.mulf %14, %18 : vector<4x16x16xf32>
    %20 = arith.addf %12, %19 : vector<4x16x16xf32>
    %21 = vector.extract_strided_slice %13 {offsets = [0, 1, 0], sizes = [4, 16, 16], strides = [1, 1, 1]} : vector<4x18x16xf32> to vector<4x16x16xf32>
    %22 = vector.extract_strided_slice %11 {offsets = [0, 3], sizes = [4, 1], strides = [1, 1]} : vector<4x9xf32> to vector<4x1xf32>
    %23 = vector.shape_cast %22 : vector<4x1xf32> to vector<4xf32>
    %24 = vector.shape_cast %23 : vector<4xf32> to vector<4x1x1xf32>
    %25 = vector.broadcast %24 : vector<4x1x1xf32> to vector<4x16x16xf32>
    %26 = arith.mulf %21, %25 : vector<4x16x16xf32>
    %27 = arith.addf %20, %26 : vector<4x16x16xf32>
    %28 = vector.extract_strided_slice %13 {offsets = [0, 2, 0], sizes = [4, 16, 16], strides = [1, 1, 1]} : vector<4x18x16xf32> to vector<4x16x16xf32>
    %29 = vector.extract_strided_slice %11 {offsets = [0, 6], sizes = [4, 1], strides = [1, 1]} : vector<4x9xf32> to vector<4x1xf32>
    %30 = vector.shape_cast %29 : vector<4x1xf32> to vector<4xf32>
    %31 = vector.shape_cast %30 : vector<4xf32> to vector<4x1x1xf32>
    %32 = vector.broadcast %31 : vector<4x1x1xf32> to vector<4x16x16xf32>
    %33 = arith.mulf %28, %32 : vector<4x16x16xf32>
    %34 = arith.addf %27, %33 : vector<4x16x16xf32>
    %c0_25 = arith.constant 0 : index
    %c0_26 = arith.constant 0 : index
    %c1_27 = arith.constant 1 : index
    %35 = vector.load %arg5[%c0_25, %c0_26, %c1_27] : memref<4x18x18xf32, #tpu.memory_space<vmem>>, vector<4x18x16xf32>
    %36 = vector.extract_strided_slice %35 {offsets = [0, 0, 0], sizes = [4, 16, 16], strides = [1, 1, 1]} : vector<4x18x16xf32> to vector<4x16x16xf32>
    %37 = vector.extract_strided_slice %11 {offsets = [0, 1], sizes = [4, 1], strides = [1, 1]} : vector<4x9xf32> to vector<4x1xf32>
    %38 = vector.shape_cast %37 : vector<4x1xf32> to vector<4xf32>
    %39 = vector.shape_cast %38 : vector<4xf32> to vector<4x1x1xf32>
    %40 = vector.broadcast %39 : vector<4x1x1xf32> to vector<4x16x16xf32>
    %41 = arith.mulf %36, %40 : vector<4x16x16xf32>
    %42 = arith.addf %34, %41 : vector<4x16x16xf32>
    %43 = vector.extract_strided_slice %35 {offsets = [0, 1, 0], sizes = [4, 16, 16], strides = [1, 1, 1]} : vector<4x18x16xf32> to vector<4x16x16xf32>
    %44 = vector.extract_strided_slice %11 {offsets = [0, 4], sizes = [4, 1], strides = [1, 1]} : vector<4x9xf32> to vector<4x1xf32>
    %45 = vector.shape_cast %44 : vector<4x1xf32> to vector<4xf32>
    %46 = vector.shape_cast %45 : vector<4xf32> to vector<4x1x1xf32>
    %47 = vector.broadcast %46 : vector<4x1x1xf32> to vector<4x16x16xf32>
    %48 = arith.mulf %43, %47 : vector<4x16x16xf32>
    %49 = arith.addf %42, %48 : vector<4x16x16xf32>
    %50 = vector.extract_strided_slice %35 {offsets = [0, 2, 0], sizes = [4, 16, 16], strides = [1, 1, 1]} : vector<4x18x16xf32> to vector<4x16x16xf32>
    %51 = vector.extract_strided_slice %11 {offsets = [0, 7], sizes = [4, 1], strides = [1, 1]} : vector<4x9xf32> to vector<4x1xf32>
    %52 = vector.shape_cast %51 : vector<4x1xf32> to vector<4xf32>
    %53 = vector.shape_cast %52 : vector<4xf32> to vector<4x1x1xf32>
    %54 = vector.broadcast %53 : vector<4x1x1xf32> to vector<4x16x16xf32>
    %55 = arith.mulf %50, %54 : vector<4x16x16xf32>
    %56 = arith.addf %49, %55 : vector<4x16x16xf32>
    %c0_28 = arith.constant 0 : index
    %c0_29 = arith.constant 0 : index
    %c2 = arith.constant 2 : index
    %57 = vector.load %arg5[%c0_28, %c0_29, %c2] : memref<4x18x18xf32, #tpu.memory_space<vmem>>, vector<4x18x16xf32>
    %58 = vector.extract_strided_slice %57 {offsets = [0, 0, 0], sizes = [4, 16, 16], strides = [1, 1, 1]} : vector<4x18x16xf32> to vector<4x16x16xf32>
    %59 = vector.extract_strided_slice %11 {offsets = [0, 2], sizes = [4, 1], strides = [1, 1]} : vector<4x9xf32> to vector<4x1xf32>
    %60 = vector.shape_cast %59 : vector<4x1xf32> to vector<4xf32>
    %61 = vector.shape_cast %60 : vector<4xf32> to vector<4x1x1xf32>
    %62 = vector.broadcast %61 : vector<4x1x1xf32> to vector<4x16x16xf32>
    %63 = arith.mulf %58, %62 : vector<4x16x16xf32>
    %64 = arith.addf %56, %63 : vector<4x16x16xf32>
    %65 = vector.extract_strided_slice %57 {offsets = [0, 1, 0], sizes = [4, 16, 16], strides = [1, 1, 1]} : vector<4x18x16xf32> to vector<4x16x16xf32>
    %66 = vector.extract_strided_slice %11 {offsets = [0, 5], sizes = [4, 1], strides = [1, 1]} : vector<4x9xf32> to vector<4x1xf32>
    %67 = vector.shape_cast %66 : vector<4x1xf32> to vector<4xf32>
    %68 = vector.shape_cast %67 : vector<4xf32> to vector<4x1x1xf32>
    %69 = vector.broadcast %68 : vector<4x1x1xf32> to vector<4x16x16xf32>
    %70 = arith.mulf %65, %69 : vector<4x16x16xf32>
    %71 = arith.addf %64, %70 : vector<4x16x16xf32>
    %72 = vector.extract_strided_slice %57 {offsets = [0, 2, 0], sizes = [4, 16, 16], strides = [1, 1, 1]} : vector<4x18x16xf32> to vector<4x16x16xf32>
    %73 = vector.extract_strided_slice %11 {offsets = [0, 8], sizes = [4, 1], strides = [1, 1]} : vector<4x9xf32> to vector<4x1xf32>
    %74 = vector.shape_cast %73 : vector<4x1xf32> to vector<4xf32>
    %75 = vector.shape_cast %74 : vector<4xf32> to vector<4x1x1xf32>
    %76 = vector.broadcast %75 : vector<4x1x1xf32> to vector<4x16x16xf32>
    %77 = arith.mulf %72, %76 : vector<4x16x16xf32>
    %78 = arith.addf %71, %77 : vector<4x16x16xf32>
    %c0_30 = arith.constant 0 : index
    %c0_31 = arith.constant 0 : index
    %c0_32 = arith.constant 0 : index
    %c0_33 = arith.constant 0 : index
    %79 = vector.load %arg4[%c0_30, %c0_31, %c0_32, %c0_33] : memref<1x4x16x16xf32, #tpu.memory_space<vmem>>, vector<1x4x16x16xf32>
    %80 = vector.shape_cast %79 : vector<1x4x16x16xf32> to vector<4x16x16xf32>
    %81 = vector.shape_cast %78 : vector<4x16x16xf32> to vector<1x4x16x16xf32>
    tpu.vector_store %arg4[%c0_30, %c0_31, %c0_32, %c0_33], %81 {strides = array<i32>} : memref<1x4x16x16xf32, #tpu.memory_space<vmem>>, vector<1x4x16x16xf32>,
    return
  }
  func.func @transform_0(%arg0: i32, %arg1: i32) -> (i32, i32) {
    %c0_i32 = arith.constant 0 : i32
    %c0_i32_0 = arith.constant 0 : i32
    return %arg1, %c0_i32 : i32, i32
  }
  func.func @transform_1(%arg0: i32, %arg1: i32) -> (i32, i32, i32, i32) {
    %c0_i32 = arith.constant 0 : i32
    %c0_i32_0 = arith.constant 0 : i32
    %c0_i32_1 = arith.constant 0 : i32
    return %arg0, %arg1, %c0_i32, %c0_i32_0 : i32, i32, i32, i32
  }
  func.func @transform_2(%arg0: i32, %arg1: i32) -> (i32, i32, i32, i32) {
    %c0_i32 = arith.constant 0 : i32
    %c0_i32_0 = arith.constant 0 : i32
    %c0_i32_1 = arith.constant 0 : i32
    return %arg0, %arg1, %c0_i32, %c0_i32_0 : i32, i32, i32, i32
  }
}

</mosaic_0001>

<llo_original>
// kernel: tpu_custom_call.1
$region0: #{tpu_custom_call.1}
  #allocation0 [shape = 'u32[]', space=smem, size = 0x4, offset = 0x4, fixed_abs, tag = 'smem constant byte address 0x4 - core index']
  #allocation1 [shape = 'u32[144,128]{1,0:T(1,128)}', space=vmem, size = 0x12000, scoped, tag = 'internal scratch']
  #allocation2 [shape = 'f32[4,18,18]{2,1,0:T(8,128)}', space=vmem, size = 0xc000, scoped, tag = 'scratch operand']
  %s0 = inlined_call_operand.hbm [shape: f32[4,9], index: 0, kind: input, shape index: {}]
  %s1 = inlined_call_operand.hbm [shape: f32[2,4,16,16], index: 1, kind: input, shape index: {}]
  %s2 = inlined_call_operand.hbm [shape: f32[2,4,16,16], index: 2, kind: output, shape index: {}]
  %s3 = sld [smem:[#allocation0]]
  $region49: #{tpu_custom_call.1} parent=0
    _
  %s5 = ssub.s32 1, %s3
  %s6 = scalar_select 0, %s5, %s3
  $region1: #{tpu_custom_call.1} parent=0
    #allocation3 [shape = 'u8[2048]{0}', space=vmem, size = 0x800, scoped, tag = 'input window, operand 0, single buffered']
    #allocation4 [shape = 's32[2]{0}', space=sflag, size = 0x8, scoped, tag = 'scoped memory for tpu_custom_call.1']
    #allocation5 [shape = 's32[2]{0}', space=sflag, size = 0x8, scoped, tag = 'scoped memory for tpu_custom_call.1']
    #allocation6 [shape = 'u8[65536]{0}', space=vmem, size = 0x10000, scoped, tag = 'input window, operand 1']
    #allocation7 [shape = 's32[2]{0}', space=sflag, size = 0x8, scoped, tag = 'scoped memory for tpu_custom_call.1']
    #allocation8 [shape = 'u8[65536]{0}', space=vmem, size = 0x10000, scoped, tag = 'output window, operand 0']
    %7 = vsyncpa [#allocation4], 0
    %8 = vsyncpa [#allocation7], 0
    %s9 = scalar_lea.sflag [#allocation7], 1
    %10 = vsyncpa %s9, 0
    %11 = vsyncpa [#allocation5], 0
    %s12 = scalar_lea.sflag [#allocation5], 1
    %13 = vsyncpa %s12, 0
    loop: start=0, step=1, limit=4
    $region2: #{tpu_custom_call.1} parent=1 // loop_pre_header
      _
    $region3: #{tpu_custom_call.1} parent=1 // loop_header
      %s15 = sphi 0, %s19
      %p16 = scmp.ge.s32.totalorder %s15, 4
      %s22 = sphi 0, %s34
      %s23 = sphi 0, %s30
      %s24 = sphi 0, %s22
      %s25 = sphi 0, %s23
      %s26 = sphi 0, %s24
      %s27 = sphi 0, %s25
      %s37 = sphi 0, %s39
      %s40 = sphi 0, %s37
      %s41 = sphi 0, %s40
      %s57 = sphi 0, %s41
      %s65 = sphi 0, %s67
      %s68 = sphi 0, %s65
      %s69 = sphi 0, %s68
      %s85 = sphi 0, %s69
      %s93 = sphi 0, %s95
      %s96 = sphi 0, %s93
      %s97 = sphi 0, %s96
      %s113 = sphi 0, %s97
    $region4: #{tpu_custom_call.1} parent=1 // loop_header_branch
      %18 = sbr.rel (%p16) target = $region8
    $region5: #{tpu_custom_call.1} parent=1 // loop_body
      %s20 = ssub.s32 %s15, 1
      %s21 = ssub.s32 %s15, 2
      %s28 = sadd.s32 1, %s23
      %p29 = scmp.ge.s32.totalorder %s28, 1
      %s30 = scalar_select %p29, 0, %s28
      %s31 = sadd.s32 1, %s22
      %s32 = scalar_select %p29, %s31, %s22
      %p33 = scmp.ge.s32.totalorder %s32, 2
      %s34 = scalar_select %p33, 0, %s32
      %s35 = ssub.s32 %s23, %s30
      %p36 = scmp.eq.s32.totalorder %s35, 0
      %s38 = sadd.s32 %s37, 1
      %s39 = scalar_select %p36, %s37, %s38
      %p42 = pneg %p36
      %p43 = scmp.eq.s32.totalorder %s15, 1
      %p44 = por %p42, %p43
      %p45 = scmp.ne.s32.totalorder %s37, %s40
      %p46 = scmp.eq.s32.totalorder %s15, 0
      %p47 = por %p45, %p46
      %p48 = scmp.ne.s32.totalorder %s37, %s40
      %p49 = scmp.eq.s32.totalorder %s20, 1
      %p50 = por %p48, %p49
      %p51 = scmp.ne.s32.totalorder %s40, %s41
      %p52 = scmp.eq.s32.totalorder %s20, 0
      %p53 = por %p51, %p52
      %p54 = scmp.ne.s32.totalorder %s40, %s41
      %p55 = scmp.eq.s32.totalorder %s21, 1
      %p56 = por %p54, %p55
      %p58 = scmp.ne.s32.totalorder %s41, %s57
      %p59 = scmp.eq.s32.totalorder %s21, 0
      %p60 = por %p58, %p59
      %s61 = ssub.s32 %s22, %s34
      %s62 = ssub.s32 %s23, %s30
      %s63 = sor.u32 %s61, %s62
      %p64 = scmp.eq.s32.totalorder %s63, 0
      %s66 = sadd.s32 %s65, 1
      %s67 = scalar_select %p64, %s65, %s66
      %p70 = pneg %p64
      %p71 = scmp.eq.s32.totalorder %s15, 1
      %p72 = por %p70, %p71
      %p73 = scmp.ne.s32.totalorder %s65, %s68
      %p74 = scmp.eq.s32.totalorder %s15, 0
      %p75 = por %p73, %p74
      %p76 = scmp.ne.s32.totalorder %s65, %s68
      %p77 = scmp.eq.s32.totalorder %s20, 1
      %p78 = por %p76, %p77
      %p79 = scmp.ne.s32.totalorder %s68, %s69
      %p80 = scmp.eq.s32.totalorder %s20, 0
      %p81 = por %p79, %p80
      %p82 = scmp.ne.s32.totalorder %s68, %s69
      %p83 = scmp.eq.s32.totalorder %s21, 1
      %p84 = por %p82, %p83
      %p86 = scmp.ne.s32.totalorder %s69, %s85
      %p87 = scmp.eq.s32.totalorder %s21, 0
      %p88 = por %p86, %p87
      %s89 = ssub.s32 %s22, %s34
      %s90 = ssub.s32 %s23, %s30
      %s91 = sor.u32 %s89, %s90
      %p92 = scmp.eq.s32.totalorder %s91, 0
      %s94 = sadd.s32 %s93, 1
      %s95 = scalar_select %p92, %s93, %s94
      %p98 = pneg %p92
      %p99 = scmp.eq.s32.totalorder %s15, 1
      %p100 = por %p98, %p99
      %p101 = scmp.ne.s32.totalorder %s93, %s96
      %p102 = scmp.eq.s32.totalorder %s15, 0
      %p103 = por %p101, %p102
      %p104 = scmp.ne.s32.totalorder %s93, %s96
      %p105 = scmp.eq.s32.totalorder %s20, 1
      %p106 = por %p104, %p105
      %p107 = scmp.ne.s32.totalorder %s96, %s97
      %p108 = scmp.eq.s32.totalorder %s20, 0
      %p109 = por %p107, %p108
      %p110 = scmp.ne.s32.totalorder %s96, %s97
      %p111 = scmp.eq.s32.totalorder %s21, 1
      %p112 = por %p110, %p111
      %p114 = scmp.ne.s32.totalorder %s97, %s113
      %p115 = scmp.eq.s32.totalorder %s21, 0
      %p116 = por %p114, %p115
      %p117 = scmp.le.s32.totalorder 1, %s15
      %p118 = scmp.lt.s32.totalorder %s15, 3
      %p119 = pnand %p117, %p118
      %p120 = pneg %p119
      // Predicated region
      $region9: #{tpu_custom_call.1} parent=5 // pred_check
        _
      $region10: #{tpu_custom_call.1} parent=5 // pred_check_branch
        %122 = sbr.rel (%p119) target = $region12
      $region11: #{tpu_custom_call.1} parent=5 // pred_region
        %s123 = ssub.s32 %s15, 1
        // Predicated region
        $region13: #{tpu_custom_call.1} parent=11 // pred_check
          %p124 = pneg %p53
        $region14: #{tpu_custom_call.1} parent=11 // pred_check_branch
          %126 = sbr.rel (%p124) target = $region16
        $region15: #{tpu_custom_call.1} parent=11 // pred_region
          %s128 = ssub.s32 64, 64
          %129 = vsyncadd [#allocation4], %s128
          %s130 = smul.addr %s25, 64
          %s131 = scalar_lea.hbm %s0, %s130
          %s133 = sshll.u32 [#allocation3], 4
          %s134 = int_to_ptr.vmem [resolvable:$true] %s133
          %136 = dma.hbm_to_vmem [thread:$0]  %s131, 64, %s134, [#allocation4]
        $region16: #{tpu_custom_call.1} parent=11 // pred_fallthru
          _
      $region12: #{tpu_custom_call.1} parent=5 // pred_fallthru
        _
      %p137 = scmp.lt.s32.totalorder %s15, 2
      // Predicated region
      $region17: #{tpu_custom_call.1} parent=5 // pred_check
        %p138 = pneg %p137
      $region18: #{tpu_custom_call.1} parent=5 // pred_check_branch
        %140 = sbr.rel (%p138) target = $region20
      $region19: #{tpu_custom_call.1} parent=5 // pred_region
        // Predicated region
        $region21: #{tpu_custom_call.1} parent=19 // pred_check
          %p141 = pneg %p75
        $region22: #{tpu_custom_call.1} parent=19 // pred_check_branch
          %143 = sbr.rel (%p141) target = $region24
        $region23: #{tpu_custom_call.1} parent=19 // pred_region
          %s144 = sand.u32 %s65, 1
          %s145 = scalar_lea.sflag [#allocation7], %s144
          %s146 = sand.u32 %s65, 1
          %s147 = smul.addr %s146, 64
          %s148 = scalar_lea.vmem [#allocation6], %s147
          %s149 = smul.u32 4, %s23
          %s151 = ssub.s32 1024, 1024
          %152 = vsyncadd %s145, %s151
          %s153 = smul.addr %s149, 2
          %s154 = smul.addr %s22, 8
          %s155 = sadd.s32 %s153, %s154
          %s156 = smul.addr %s155, 128
          %s157 = scalar_lea.hbm %s1, %s156
          %s158 = sshll.u32 %s148, 4
          %s159 = int_to_ptr.vmem [resolvable:$true] %s158
          %164 = dma.hbm_to_vmem [thread:$0]  %s157, 1024, %s159, %s145, 128, 128, 8
        $region24: #{tpu_custom_call.1} parent=19 // pred_fallthru
          _
      $region20: #{tpu_custom_call.1} parent=5 // pred_fallthru
        _
      %p165 = scmp.le.s32.totalorder 1, %s15
      %p166 = scmp.lt.s32.totalorder %s15, 3
      %p167 = pnand %p165, %p166
      %p168 = pneg %p167
      // Predicated region
      $region25: #{tpu_custom_call.1} parent=5 // pred_check
        _
      $region26: #{tpu_custom_call.1} parent=5 // pred_check_branch
        %170 = sbr.rel (%p167) target = $region28
      $region27: #{tpu_custom_call.1} parent=5 // pred_region
        %s171 = ssub.s32 %s15, 1
        // Predicated region
        $region29: #{tpu_custom_call.1} parent=27 // pred_check
          %p172 = pneg %p53
        $region30: #{tpu_custom_call.1} parent=27 // pred_check_branch
          %174 = sbr.rel (%p172) target = $region32
        $region31: #{tpu_custom_call.1} parent=27 // pred_region
          %175 = dma.done [#allocation4], 64
        $region32: #{tpu_custom_call.1} parent=27 // pred_fallthru
          _
        %s176 = sand.u32 %s68, 1
        %s177 = scalar_lea.sflag [#allocation7], %s176
        %s178 = sand.u32 %s68, 1
        %s179 = smul.addr %s178, 64
        %s180 = scalar_lea.vmem [#allocation6], %s179
        // Predicated region
        $region33: #{tpu_custom_call.1} parent=27 // pred_check
          %p181 = pneg %p81
        $region34: #{tpu_custom_call.1} parent=27 // pred_check_branch
          %183 = sbr.rel (%p181) target = $region36
        $region35: #{tpu_custom_call.1} parent=27 // pred_region
          %184 = dma.done %s177, 1024
        $region36: #{tpu_custom_call.1} parent=27 // pred_fallthru
          _
        %p185 = pneg %p53
        %p186 = pneg %p50
        %s187 = sand.u32 %s68, 1
        %s188 = scalar_lea.sflag [#allocation7], %s187
        %s189 = sand.u32 %s68, 1
        %s190 = smul.addr %s189, 64
        %s191 = scalar_lea.vmem [#allocation6], %s190
        %p192 = pneg %p81
        %p193 = pneg %p78
        %p194 = pneg %p109
        %p195 = pneg %p106
        %s196 = sand.u32 %s96, 1
        %s197 = scalar_lea.sflag [#allocation5], %s196
        %s198 = sand.u32 %s96, 1
        %s199 = smul.addr %s198, 64
        %s200 = scalar_lea.vmem [#allocation8], %s199
        %s201 = smul.u32 4, %s25
        %s202 = smul.u32 4, %s25
        %v203 = vld [vmem:[%s180] sm:$0xff]
        %v204 = vld [vmem:[%s180 + $0x8] sm:$0xff]
        %v205 = vld [vmem:[%s180 + $0x10] sm:$0xff]
        %v206 = vld [vmem:[%s180 + $0x18] sm:$0xff]
        %v207 = vld [vmem:[%s180 + $0x20] sm:$0xff]
        %v208 = vld [vmem:[%s180 + $0x28] sm:$0xff]
        %v209 = vld [vmem:[%s180 + $0x30] sm:$0xff]
        %v210 = vld [vmem:[%s180 + $0x38] sm:$0xff]
        %vm211 = vcmask 139264
        %212 = vst.msk [vmem:[#allocation2] sm:$0x1] %vm211, 0.0
        %213 = vst.msk [vmem:[#allocation2 + $0x18] sm:$0x1] %vm211, 0.0
        %214 = vst.msk [vmem:[#allocation2 + $0x30] sm:$0x1] %vm211, 0.0
        %215 = vst.msk [vmem:[#allocation2 + $0x48] sm:$0x1] %vm211, 0.0
        %216 = vst.msk [vmem:[#allocation2 + $0x11] sm:$0x1] %vm211, 0.0
        %217 = vst.msk [vmem:[#allocation2 + $0x29] sm:$0x1] %vm211, 0.0
        %218 = vst.msk [vmem:[#allocation2 + $0x41] sm:$0x1] %vm211, 0.0
        %219 = vst.msk [vmem:[#allocation2 + $0x59] sm:$0x1] %vm211, 0.0
        %vm220 = vcmask 7168
        %221 = vst.msk [vmem:[#allocation2 + $0x1] sm:$0xff] %vm220, 0.0
        %222 = vst.msk [vmem:[#allocation2 + $0x9] sm:$0xff] %vm220, 0.0
        %223 = vst.msk [vmem:[#allocation2 + $0x19] sm:$0xff] %vm220, 0.0
        %224 = vst.msk [vmem:[#allocation2 + $0x21] sm:$0xff] %vm220, 0.0
        %225 = vst.msk [vmem:[#allocation2 + $0x31] sm:$0xff] %vm220, 0.0
        %226 = vst.msk [vmem:[#allocation2 + $0x39] sm:$0xff] %vm220, 0.0
        %227 = vst.msk [vmem:[#allocation2 + $0x49] sm:$0xff] %vm220, 0.0
        %228 = vst.msk [vmem:[#allocation2 + $0x51] sm:$0xff] %vm220, 0.0
        %vm229 = vcmask 146568
        %230 = vst.msk [vmem:[#allocation2 + $0x1] sm:$0xff] %vm229, 0.0
        %231 = vst.msk [vmem:[#allocation2 + $0x9] sm:$0xff] %vm229, 0.0
        %232 = vst.msk [vmem:[#allocation2 + $0x19] sm:$0xff] %vm229, 0.0
        %233 = vst.msk [vmem:[#allocation2 + $0x21] sm:$0xff] %vm229, 0.0
        %234 = vst.msk [vmem:[#allocation2 + $0x31] sm:$0xff] %vm229, 0.0
        %235 = vst.msk [vmem:[#allocation2 + $0x39] sm:$0xff] %vm229, 0.0
        %236 = vst.msk [vmem:[#allocation2 + $0x49] sm:$0xff] %vm229, 0.0
        %237 = vst.msk [vmem:[#allocation2 + $0x51] sm:$0xff] %vm229, 0.0
        %246 = vrot.lane.b32.xlu0 %v203, 1
        %v247 = vpop.permute.xlu0 %246
        %248 = vrot.lane.b32.xlu0 %v204, 1
        %v249 = vpop.permute.xlu0 %248
        %250 = vrot.lane.b32.xlu0 %v205, 1
        %v251 = vpop.permute.xlu0 %250
        %252 = vrot.lane.b32.xlu0 %v206, 1
        %v253 = vpop.permute.xlu0 %252
        %254 = vrot.lane.b32.xlu0 %v207, 1
        %v255 = vpop.permute.xlu0 %254
        %256 = vrot.lane.b32.xlu0 %v208, 1
        %v257 = vpop.permute.xlu0 %256
        %258 = vrot.lane.b32.xlu0 %v209, 1
        %v259 = vpop.permute.xlu0 %258
        %260 = vrot.lane.b32.xlu0 %v210, 1
        %v261 = vpop.permute.xlu0 %260
        %vm270 = vcmask 138248
        %271 = vst.msk [vmem:[#allocation2 + $0x1] sm:$0xff] %vm270, %v247
        %272 = vst.msk [vmem:[#allocation2 + $0x9] sm:$0xff] %vm270, %v249
        %273 = vst.msk [vmem:[#allocation2 + $0x19] sm:$0xff] %vm270, %v251
        %274 = vst.msk [vmem:[#allocation2 + $0x21] sm:$0xff] %vm270, %v253
        %275 = vst.msk [vmem:[#allocation2 + $0x31] sm:$0xff] %vm270, %v255
        %276 = vst.msk [vmem:[#allocation2 + $0x39] sm:$0xff] %vm270, %v257
        %277 = vst.msk [vmem:[#allocation2 + $0x49] sm:$0xff] %vm270, %v259
        %278 = vst.msk [vmem:[#allocation2 + $0x51] sm:$0xff] %vm270, %v261
        %v279 = vld [vmem:[#allocation3] sm:$0xf]
        %v280 = vld [vmem:[#allocation2] sm:$0xff]
        %v281 = vld [vmem:[#allocation2 + $0x8] sm:$0xff]
        %v282 = vld [vmem:[#allocation2 + $0x10] sm:$0x3]
        %v283 = vld [vmem:[#allocation2 + $0x18] sm:$0xff]
        %v284 = vld [vmem:[#allocation2 + $0x20] sm:$0xff]
        %v285 = vld [vmem:[#allocation2 + $0x28] sm:$0x3]
        %v286 = vld [vmem:[#allocation2 + $0x30] sm:$0xff]
        %v287 = vld [vmem:[#allocation2 + $0x38] sm:$0xff]
        %v288 = vld [vmem:[#allocation2 + $0x40] sm:$0x3]
        %v289 = vld [vmem:[#allocation2 + $0x48] sm:$0xff]
        %v290 = vld [vmem:[#allocation2 + $0x50] sm:$0xff]
        %v291 = vld [vmem:[#allocation2 + $0x58] sm:$0x3]
        %v294 = vunpack.c.l.s4 1966171168
        %v295 = vunpack.c.0.s8 %v294
        %v296 = vlaneseq
        %v297 = vshrl.u32 %v296, 7
        %v298 = vsub.s32 %v295, %v297
        %v299 = vrot.slane %v279, %v298
        %v300 = vcombine.high %v299, %v299
        %v302 = vunpack.c.l.s4 1966171168
        %v303 = vunpack.c.0.s8 %v302
        %v304 = vlaneseq
        %v305 = vshrl.u32 %v304, 7
        %v306 = vsub.s32 %v303, %v305
        %v307 = vrot.slane %v299, %v306
        %v309 = vunpack.c.l.s4 1966171168
        %v310 = vunpack.c.0.s8 %v309
        %v311 = vlaneseq
        %v312 = vshrl.u32 %v311, 7
        %v313 = vsub.s32 %v310, %v312
        %v314 = vrot.slane %v300, %v313
        %v315 = vcombine.high %v307, %v307
        %v316 = vcombine.high %v314, %v314
        %v317 = vlaneseq
        %v318 = vshrl.u32 %v317, 7
        %v319 = vsub.s32 0, %v318
        %v320 = vrot.slane %v307, %v319
        %v321 = vlaneseq
        %v322 = vshrl.u32 %v321, 7
        %v323 = vsub.s32 0, %v322
        %v324 = vrot.slane %v314, %v323
        %v325 = vlaneseq
        %v326 = vshrl.u32 %v325, 7
        %v327 = vsub.s32 0, %v326
        %v328 = vrot.slane %v315, %v327
        %v329 = vlaneseq
        %v330 = vshrl.u32 %v329, 7
        %v331 = vsub.s32 0, %v330
        %v332 = vrot.slane %v316, %v331
        %333 = vset.pattern.permute.xlu0 0
        %334 = vperm.xlu0 %333, %v320
        %v335 = vpop.permute.xlu0 %334
        %337 = vset.pattern.permute.xlu0 0
        %338 = vperm.xlu0 %337, %v324
        %v339 = vpop.permute.xlu0 %338
        %341 = vset.pattern.permute.xlu0 0
        %342 = vperm.xlu0 %341, %v328
        %v343 = vpop.permute.xlu0 %342
        %345 = vset.pattern.permute.xlu0 0
        %346 = vperm.xlu0 %345, %v332
        %v347 = vpop.permute.xlu0 %346
        %v349 = vmul.f32 %v280, %v335
        %v350 = vmul.f32 %v281, %v335
        %v351 = vmul.f32 %v283, %v339
        %v352 = vmul.f32 %v284, %v339
        %v353 = vmul.f32 %v286, %v343
        %v354 = vmul.f32 %v287, %v343
        %v355 = vmul.f32 %v289, %v347
        %v356 = vmul.f32 %v290, %v347
        %v357 = vadd.f32 %v349, 0.0
        %v358 = vadd.f32 %v350, 0.0
        %v359 = vadd.f32 %v351, 0.0
        %v360 = vadd.f32 %v352, 0.0
        %v361 = vadd.f32 %v353, 0.0
        %v362 = vadd.f32 %v354, 0.0
        %v363 = vadd.f32 %v355, 0.0
        %v364 = vadd.f32 %v356, 0.0
        %365 = vset.pattern.permute.xlu0 3
        %366 = vperm.xlu0 %365, %v320
        %v367 = vpop.permute.xlu0 %366
        %369 = vset.pattern.permute.xlu0 3
        %370 = vperm.xlu0 %369, %v324
        %v371 = vpop.permute.xlu0 %370
        %373 = vset.pattern.permute.xlu0 3
        %374 = vperm.xlu0 %373, %v328
        %v375 = vpop.permute.xlu0 %374
        %377 = vset.pattern.permute.xlu0 3
        %378 = vperm.xlu0 %377, %v332
        %v379 = vpop.permute.xlu0 %378
        %v381 = vmul.f32 %v280, %v367
        %v382 = vmul.f32 %v281, %v367
        %v383 = vmul.f32 %v282, %v367
        %v384 = vmul.f32 %v283, %v371
        %v385 = vmul.f32 %v284, %v371
        %v386 = vmul.f32 %v285, %v371
        %v387 = vmul.f32 %v286, %v375
        %v388 = vmul.f32 %v287, %v375
        %v389 = vmul.f32 %v288, %v375
        %v390 = vmul.f32 %v289, %v379
        %v391 = vmul.f32 %v290, %v379
        %v392 = vmul.f32 %v291, %v379
        %vm405 = vcmask 1046528
        %v406 = vrot.slane %v381, 1
        %v407 = vrot.slane %v382, 1
        %v408 = vsel %vm405, %v406, %v407
        %v409 = vrot.slane %v383, 1
        %v410 = vsel %vm405, %v407, %v409
        %v411 = vrot.slane %v384, 1
        %v412 = vrot.slane %v385, 1
        %v413 = vsel %vm405, %v411, %v412
        %v414 = vrot.slane %v386, 1
        %v415 = vsel %vm405, %v412, %v414
        %v416 = vrot.slane %v387, 1
        %v417 = vrot.slane %v388, 1
        %v418 = vsel %vm405, %v416, %v417
        %v419 = vrot.slane %v389, 1
        %v420 = vsel %vm405, %v417, %v419
        %v421 = vrot.slane %v390, 1
        %v422 = vrot.slane %v391, 1
        %v423 = vsel %vm405, %v421, %v422
        %v424 = vrot.slane %v392, 1
        %v425 = vsel %vm405, %v422, %v424
        %v434 = vadd.f32 %v357, %v408
        %v435 = vadd.f32 %v358, %v410
        %v436 = vadd.f32 %v359, %v413
        %v437 = vadd.f32 %v360, %v415
        %v438 = vadd.f32 %v361, %v418
        %v439 = vadd.f32 %v362, %v420
        %v440 = vadd.f32 %v363, %v423
        %v441 = vadd.f32 %v364, %v425
        %442 = vset.pattern.permute.xlu0 6
        %443 = vperm.xlu0 %442, %v320
        %v444 = vpop.permute.xlu0 %443
        %446 = vset.pattern.permute.xlu0 6
        %447 = vperm.xlu0 %446, %v324
        %v448 = vpop.permute.xlu0 %447
        %450 = vset.pattern.permute.xlu0 6
        %451 = vperm.xlu0 %450, %v328
        %v452 = vpop.permute.xlu0 %451
        %454 = vset.pattern.permute.xlu0 6
        %455 = vperm.xlu0 %454, %v332
        %v456 = vpop.permute.xlu0 %455
        %v458 = vmul.f32 %v280, %v444
        %v459 = vmul.f32 %v281, %v444
        %v460 = vmul.f32 %v282, %v444
        %v461 = vmul.f32 %v283, %v448
        %v462 = vmul.f32 %v284, %v448
        %v463 = vmul.f32 %v285, %v448
        %v464 = vmul.f32 %v286, %v452
        %v465 = vmul.f32 %v287, %v452
        %v466 = vmul.f32 %v288, %v452
        %v467 = vmul.f32 %v289, %v456
        %v468 = vmul.f32 %v290, %v456
        %v469 = vmul.f32 %v291, %v456
        %vm482 = vcmask 1045504
        %v483 = vrot.slane %v458, 2
        %v484 = vrot.slane %v459, 2
        %v485 = vsel %vm482, %v483, %v484
        %v486 = vrot.slane %v460, 2
        %v487 = vsel %vm482, %v484, %v486
        %v488 = vrot.slane %v461, 2
        %v489 = vrot.slane %v462, 2
        %v490 = vsel %vm482, %v488, %v489
        %v491 = vrot.slane %v463, 2
        %v492 = vsel %vm482, %v489, %v491
        %v493 = vrot.slane %v464, 2
        %v494 = vrot.slane %v465, 2
        %v495 = vsel %vm482, %v493, %v494
        %v496 = vrot.slane %v466, 2
        %v497 = vsel %vm482, %v494, %v496
        %v498 = vrot.slane %v467, 2
        %v499 = vrot.slane %v468, 2
        %v500 = vsel %vm482, %v498, %v499
        %v501 = vrot.slane %v469, 2
        %v502 = vsel %vm482, %v499, %v501
        %v511 = vadd.f32 %v434, %v485
        %v512 = vadd.f32 %v435, %v487
        %v513 = vadd.f32 %v436, %v490
        %v514 = vadd.f32 %v437, %v492
        %v515 = vadd.f32 %v438, %v495
        %v516 = vadd.f32 %v439, %v497
        %v517 = vadd.f32 %v440, %v500
        %v518 = vadd.f32 %v441, %v502
        %v519 = vld [vmem:[#allocation2] sm:$0xff]
        %v520 = vld [vmem:[#allocation2 + $0x8] sm:$0xff]
        %v521 = vld [vmem:[#allocation2 + $0x10] sm:$0x3]
        %v522 = vld [vmem:[#allocation2 + $0x18] sm:$0xff]
        %v523 = vld [vmem:[#allocation2 + $0x20] sm:$0xff]
        %v524 = vld [vmem:[#allocation2 + $0x28] sm:$0x3]
        %v525 = vld [vmem:[#allocation2 + $0x30] sm:$0xff]
        %v526 = vld [vmem:[#allocation2 + $0x38] sm:$0xff]
        %v527 = vld [vmem:[#allocation2 + $0x40] sm:$0x3]
        %v528 = vld [vmem:[#allocation2 + $0x48] sm:$0xff]
        %v529 = vld [vmem:[#allocation2 + $0x50] sm:$0xff]
        %v530 = vld [vmem:[#allocation2 + $0x58] sm:$0x3]
        %531 = vset.pattern.permute.xlu0 1
        %532 = vperm.xlu0 %531, %v320
        %v533 = vpop.permute.xlu0 %532
        %535 = vset.pattern.permute.xlu0 1
        %536 = vperm.xlu0 %535, %v324
        %v537 = vpop.permute.xlu0 %536
        %539 = vset.pattern.permute.xlu0 1
        %540 = vperm.xlu0 %539, %v328
        %v541 = vpop.permute.xlu0 %540
        %543 = vset.pattern.permute.xlu0 1
        %544 = vperm.xlu0 %543, %v332
        %v545 = vpop.permute.xlu0 %544
        %v547 = vmul.f32 %v519, %v533
        %v548 = vmul.f32 %v520, %v533
        %v549 = vmul.f32 %v522, %v537
        %v550 = vmul.f32 %v523, %v537
        %v551 = vmul.f32 %v525, %v541
        %v552 = vmul.f32 %v526, %v541
        %v553 = vmul.f32 %v528, %v545
        %v554 = vmul.f32 %v529, %v545
        %563 = vrot.lane.b32.xlu0 %v547, 127
        %v564 = vpop.permute.xlu0 %563
        %565 = vrot.lane.b32.xlu0 %v548, 127
        %v566 = vpop.permute.xlu0 %565
        %567 = vrot.lane.b32.xlu0 %v549, 127
        %v568 = vpop.permute.xlu0 %567
        %569 = vrot.lane.b32.xlu0 %v550, 127
        %v570 = vpop.permute.xlu0 %569
        %571 = vrot.lane.b32.xlu0 %v551, 127
        %v572 = vpop.permute.xlu0 %571
        %573 = vrot.lane.b32.xlu0 %v552, 127
        %v574 = vpop.permute.xlu0 %573
        %575 = vrot.lane.b32.xlu0 %v553, 127
        %v576 = vpop.permute.xlu0 %575
        %577 = vrot.lane.b32.xlu0 %v554, 127
        %v578 = vpop.permute.xlu0 %577
        %v587 = vadd.f32 %v511, %v564
        %v588 = vadd.f32 %v512, %v566
        %v589 = vadd.f32 %v513, %v568
        %v590 = vadd.f32 %v514, %v570
        %v591 = vadd.f32 %v515, %v572
        %v592 = vadd.f32 %v516, %v574
        %v593 = vadd.f32 %v517, %v576
        %v594 = vadd.f32 %v518, %v578
        %595 = vset.pattern.permute.xlu0 4
        %596 = vperm.xlu0 %595, %v320
        %v597 = vpop.permute.xlu0 %596
        %599 = vset.pattern.permute.xlu0 4
        %600 = vperm.xlu0 %599, %v324
        %v601 = vpop.permute.xlu0 %600
        %603 = vset.pattern.permute.xlu0 4
        %604 = vperm.xlu0 %603, %v328
        %v605 = vpop.permute.xlu0 %604
        %607 = vset.pattern.permute.xlu0 4
        %608 = vperm.xlu0 %607, %v332
        %v609 = vpop.permute.xlu0 %608
        %v611 = vmul.f32 %v519, %v597
        %v612 = vmul.f32 %v520, %v597
        %v613 = vmul.f32 %v521, %v597
        %v614 = vmul.f32 %v522, %v601
        %v615 = vmul.f32 %v523, %v601
        %v616 = vmul.f32 %v524, %v601
        %v617 = vmul.f32 %v525, %v605
        %v618 = vmul.f32 %v526, %v605
        %v619 = vmul.f32 %v527, %v605
        %v620 = vmul.f32 %v528, %v609
        %v621 = vmul.f32 %v529, %v609
        %v622 = vmul.f32 %v530, %v609
        %v635 = vrot.slane %v611, 1
        %v636 = vrot.slane %v612, 1
        %v637 = vsel %vm405, %v635, %v636
        %v638 = vrot.slane %v613, 1
        %v639 = vsel %vm405, %v636, %v638
        %v640 = vrot.slane %v614, 1
        %v641 = vrot.slane %v615, 1
        %v642 = vsel %vm405, %v640, %v641
        %v643 = vrot.slane %v616, 1
        %v644 = vsel %vm405, %v641, %v643
        %v645 = vrot.slane %v617, 1
        %v646 = vrot.slane %v618, 1
        %v647 = vsel %vm405, %v645, %v646
        %v648 = vrot.slane %v619, 1
        %v649 = vsel %vm405, %v646, %v648
        %v650 = vrot.slane %v620, 1
        %v651 = vrot.slane %v621, 1
        %v652 = vsel %vm405, %v650, %v651
        %v653 = vrot.slane %v622, 1
        %v654 = vsel %vm405, %v651, %v653
        %655 = vrot.lane.b32.xlu0 %v637, 127
        %v656 = vpop.permute.xlu0 %655
        %657 = vrot.lane.b32.xlu0 %v639, 127
        %v658 = vpop.permute.xlu0 %657
        %659 = vrot.lane.b32.xlu0 %v642, 127
        %v660 = vpop.permute.xlu0 %659
        %661 = vrot.lane.b32.xlu0 %v644, 127
        %v662 = vpop.permute.xlu0 %661
        %663 = vrot.lane.b32.xlu0 %v647, 127
        %v664 = vpop.permute.xlu0 %663
        %665 = vrot.lane.b32.xlu0 %v649, 127
        %v666 = vpop.permute.xlu0 %665
        %667 = vrot.lane.b32.xlu0 %v652, 127
        %v668 = vpop.permute.xlu0 %667
        %669 = vrot.lane.b32.xlu0 %v654, 127
        %v670 = vpop.permute.xlu0 %669
        %v679 = vadd.f32 %v587, %v656
        %v680 = vadd.f32 %v588, %v658
        %v681 = vadd.f32 %v589, %v660
        %v682 = vadd.f32 %v590, %v662
        %v683 = vadd.f32 %v591, %v664
        %v684 = vadd.f32 %v592, %v666
        %v685 = vadd.f32 %v593, %v668
        %v686 = vadd.f32 %v594, %v670
        %687 = vset.pattern.permute.xlu0 7
        %688 = vperm.xlu0 %687, %v320
        %v689 = vpop.permute.xlu0 %688
        %691 = vset.pattern.permute.xlu0 7
        %692 = vperm.xlu0 %691, %v324
        %v693 = vpop.permute.xlu0 %692
        %695 = vset.pattern.permute.xlu0 7
        %696 = vperm.xlu0 %695, %v328
        %v697 = vpop.permute.xlu0 %696
        %699 = vset.pattern.permute.xlu0 7
        %700 = vperm.xlu0 %699, %v332
        %v701 = vpop.permute.xlu0 %700
        %v703 = vmul.f32 %v519, %v689
        %v704 = vmul.f32 %v520, %v689
        %v705 = vmul.f32 %v521, %v689
        %v706 = vmul.f32 %v522, %v693
        %v707 = vmul.f32 %v523, %v693
        %v708 = vmul.f32 %v524, %v693
        %v709 = vmul.f32 %v525, %v697
        %v710 = vmul.f32 %v526, %v697
        %v711 = vmul.f32 %v527, %v697
        %v712 = vmul.f32 %v528, %v701
        %v713 = vmul.f32 %v529, %v701
        %v714 = vmul.f32 %v530, %v701
        %v727 = vrot.slane %v703, 2
        %v728 = vrot.slane %v704, 2
        %v729 = vsel %vm482, %v727, %v728
        %v730 = vrot.slane %v705, 2
        %v731 = vsel %vm482, %v728, %v730
        %v732 = vrot.slane %v706, 2
        %v733 = vrot.slane %v707, 2
        %v734 = vsel %vm482, %v732, %v733
        %v735 = vrot.slane %v708, 2
        %v736 = vsel %vm482, %v733, %v735
        %v737 = vrot.slane %v709, 2
        %v738 = vrot.slane %v710, 2
        %v739 = vsel %vm482, %v737, %v738
        %v740 = vrot.slane %v711, 2
        %v741 = vsel %vm482, %v738, %v740
        %v742 = vrot.slane %v712, 2
        %v743 = vrot.slane %v713, 2
        %v744 = vsel %vm482, %v742, %v743
        %v745 = vrot.slane %v714, 2
        %v746 = vsel %vm482, %v743, %v745
        %747 = vrot.lane.b32.xlu0 %v729, 127
        %v748 = vpop.permute.xlu0 %747
        %749 = vrot.lane.b32.xlu0 %v731, 127
        %v750 = vpop.permute.xlu0 %749
        %751 = vrot.lane.b32.xlu0 %v734, 127
        %v752 = vpop.permute.xlu0 %751
        %753 = vrot.lane.b32.xlu0 %v736, 127
        %v754 = vpop.permute.xlu0 %753
        %755 = vrot.lane.b32.xlu0 %v739, 127
        %v756 = vpop.permute.xlu0 %755
        %757 = vrot.lane.b32.xlu0 %v741, 127
        %v758 = vpop.permute.xlu0 %757
        %759 = vrot.lane.b32.xlu0 %v744, 127
        %v760 = vpop.permute.xlu0 %759
        %761 = vrot.lane.b32.xlu0 %v746, 127
        %v762 = vpop.permute.xlu0 %761
        %v771 = vadd.f32 %v679, %v748
        %v772 = vadd.f32 %v680, %v750
        %v773 = vadd.f32 %v681, %v752
        %v774 = vadd.f32 %v682, %v754
        %v775 = vadd.f32 %v683, %v756
        %v776 = vadd.f32 %v684, %v758
        %v777 = vadd.f32 %v685, %v760
        %v778 = vadd.f32 %v686, %v762
        %v779 = vld [vmem:[#allocation2] sm:$0xff]
        %v780 = vld [vmem:[#allocation2 + $0x8] sm:$0xff]
        %v781 = vld [vmem:[#allocation2 + $0x10] sm:$0x3]
        %v782 = vld [vmem:[#allocation2 + $0x18] sm:$0xff]
        %v783 = vld [vmem:[#allocation2 + $0x20] sm:$0xff]
        %v784 = vld [vmem:[#allocation2 + $0x28] sm:$0x3]
        %v785 = vld [vmem:[#allocation2 + $0x30] sm:$0xff]
        %v786 = vld [vmem:[#allocation2 + $0x38] sm:$0xff]
        %v787 = vld [vmem:[#allocation2 + $0x40] sm:$0x3]
        %v788 = vld [vmem:[#allocation2 + $0x48] sm:$0xff]
        %v789 = vld [vmem:[#allocation2 + $0x50] sm:$0xff]
        %v790 = vld [vmem:[#allocation2 + $0x58] sm:$0x3]
        %791 = vset.pattern.permute.xlu0 2
        %792 = vperm.xlu0 %791, %v320
        %v793 = vpop.permute.xlu0 %792
        %795 = vset.pattern.permute.xlu0 2
        %796 = vperm.xlu0 %795, %v324
        %v797 = vpop.permute.xlu0 %796
        %799 = vset.pattern.permute.xlu0 2
        %800 = vperm.xlu0 %799, %v328
        %v801 = vpop.permute.xlu0 %800
        %803 = vset.pattern.permute.xlu0 2
        %804 = vperm.xlu0 %803, %v332
        %v805 = vpop.permute.xlu0 %804
        %v807 = vmul.f32 %v779, %v793
        %v808 = vmul.f32 %v780, %v793
        %v809 = vmul.f32 %v782, %v797
        %v810 = vmul.f32 %v783, %v797
        %v811 = vmul.f32 %v785, %v801
        %v812 = vmul.f32 %v786, %v801
        %v813 = vmul.f32 %v788, %v805
        %v814 = vmul.f32 %v789, %v805
        %823 = vrot.lane.b32.xlu0 %v807, 126
        %v824 = vpop.permute.xlu0 %823
        %825 = vrot.lane.b32.xlu0 %v808, 126
        %v826 = vpop.permute.xlu0 %825
        %827 = vrot.lane.b32.xlu0 %v809, 126
        %v828 = vpop.permute.xlu0 %827
        %829 = vrot.lane.b32.xlu0 %v810, 126
        %v830 = vpop.permute.xlu0 %829
        %831 = vrot.lane.b32.xlu0 %v811, 126
        %v832 = vpop.permute.xlu0 %831
        %833 = vrot.lane.b32.xlu0 %v812, 126
        %v834 = vpop.permute.xlu0 %833
        %835 = vrot.lane.b32.xlu0 %v813, 126
        %v836 = vpop.permute.xlu0 %835
        %837 = vrot.lane.b32.xlu0 %v814, 126
        %v838 = vpop.permute.xlu0 %837
        %v847 = vadd.f32 %v771, %v824
        %v848 = vadd.f32 %v772, %v826
        %v849 = vadd.f32 %v773, %v828
        %v850 = vadd.f32 %v774, %v830
        %v851 = vadd.f32 %v775, %v832
        %v852 = vadd.f32 %v776, %v834
        %v853 = vadd.f32 %v777, %v836
        %v854 = vadd.f32 %v778, %v838
        %855 = vset.pattern.permute.xlu0 5
        %856 = vperm.xlu0 %855, %v320
        %v857 = vpop.permute.xlu0 %856
        %859 = vset.pattern.permute.xlu0 5
        %860 = vperm.xlu0 %859, %v324
        %v861 = vpop.permute.xlu0 %860
        %863 = vset.pattern.permute.xlu0 5
        %864 = vperm.xlu0 %863, %v328
        %v865 = vpop.permute.xlu0 %864
        %867 = vset.pattern.permute.xlu0 5
        %868 = vperm.xlu0 %867, %v332
        %v869 = vpop.permute.xlu0 %868
        %v871 = vmul.f32 %v779, %v857
        %v872 = vmul.f32 %v780, %v857
        %v873 = vmul.f32 %v781, %v857
        %v874 = vmul.f32 %v782, %v861
        %v875 = vmul.f32 %v783, %v861
        %v876 = vmul.f32 %v784, %v861
        %v877 = vmul.f32 %v785, %v865
        %v878 = vmul.f32 %v786, %v865
        %v879 = vmul.f32 %v787, %v865
        %v880 = vmul.f32 %v788, %v869
        %v881 = vmul.f32 %v789, %v869
        %v882 = vmul.f32 %v790, %v869
        %v895 = vrot.slane %v871, 1
        %v896 = vrot.slane %v872, 1
        %v897 = vsel %vm405, %v895, %v896
        %v898 = vrot.slane %v873, 1
        %v899 = vsel %vm405, %v896, %v898
        %v900 = vrot.slane %v874, 1
        %v901 = vrot.slane %v875, 1
        %v902 = vsel %vm405, %v900, %v901
        %v903 = vrot.slane %v876, 1
        %v904 = vsel %vm405, %v901, %v903
        %v905 = vrot.slane %v877, 1
        %v906 = vrot.slane %v878, 1
        %v907 = vsel %vm405, %v905, %v906
        %v908 = vrot.slane %v879, 1
        %v909 = vsel %vm405, %v906, %v908
        %v910 = vrot.slane %v880, 1
        %v911 = vrot.slane %v881, 1
        %v912 = vsel %vm405, %v910, %v911
        %v913 = vrot.slane %v882, 1
        %v914 = vsel %vm405, %v911, %v913
        %915 = vrot.lane.b32.xlu0 %v897, 126
        %v916 = vpop.permute.xlu0 %915
        %917 = vrot.lane.b32.xlu0 %v899, 126
        %v918 = vpop.permute.xlu0 %917
        %919 = vrot.lane.b32.xlu0 %v902, 126
        %v920 = vpop.permute.xlu0 %919
        %921 = vrot.lane.b32.xlu0 %v904, 126
        %v922 = vpop.permute.xlu0 %921
        %923 = vrot.lane.b32.xlu0 %v907, 126
        %v924 = vpop.permute.xlu0 %923
        %925 = vrot.lane.b32.xlu0 %v909, 126
        %v926 = vpop.permute.xlu0 %925
        %927 = vrot.lane.b32.xlu0 %v912, 126
        %v928 = vpop.permute.xlu0 %927
        %929 = vrot.lane.b32.xlu0 %v914, 126
        %v930 = vpop.permute.xlu0 %929
        %v939 = vadd.f32 %v847, %v916
        %v940 = vadd.f32 %v848, %v918
        %v941 = vadd.f32 %v849, %v920
        %v942 = vadd.f32 %v850, %v922
        %v943 = vadd.f32 %v851, %v924
        %v944 = vadd.f32 %v852, %v926
        %v945 = vadd.f32 %v853, %v928
        %v946 = vadd.f32 %v854, %v930
        %947 = vset.pattern.permute.xlu0 8
        %948 = vperm.xlu0 %947, %v320
        %v949 = vpop.permute.xlu0 %948
        %951 = vset.pattern.permute.xlu0 8
        %952 = vperm.xlu0 %951, %v324
        %v953 = vpop.permute.xlu0 %952
        %955 = vset.pattern.permute.xlu0 8
        %956 = vperm.xlu0 %955, %v328
        %v957 = vpop.permute.xlu0 %956
        %959 = vset.pattern.permute.xlu0 8
        %960 = vperm.xlu0 %959, %v332
        %v961 = vpop.permute.xlu0 %960
        %v963 = vmul.f32 %v779, %v949
        %v964 = vmul.f32 %v780, %v949
        %v965 = vmul.f32 %v781, %v949
        %v966 = vmul.f32 %v782, %v953
        %v967 = vmul.f32 %v783, %v953
        %v968 = vmul.f32 %v784, %v953
        %v969 = vmul.f32 %v785, %v957
        %v970 = vmul.f32 %v786, %v957
        %v971 = vmul.f32 %v787, %v957
        %v972 = vmul.f32 %v788, %v961
        %v973 = vmul.f32 %v789, %v961
        %v974 = vmul.f32 %v790, %v961
        %v987 = vrot.slane %v963, 2
        %v988 = vrot.slane %v964, 2
        %v989 = vsel %vm482, %v987, %v988
        %v990 = vrot.slane %v965, 2
        %v991 = vsel %vm482, %v988, %v990
        %v992 = vrot.slane %v966, 2
        %v993 = vrot.slane %v967, 2
        %v994 = vsel %vm482, %v992, %v993
        %v995 = vrot.slane %v968, 2
        %v996 = vsel %vm482, %v993, %v995
        %v997 = vrot.slane %v969, 2
        %v998 = vrot.slane %v970, 2
        %v999 = vsel %vm482, %v997, %v998
        %v1000 = vrot.slane %v971, 2
        %v1001 = vsel %vm482, %v998, %v1000
        %v1002 = vrot.slane %v972, 2
        %v1003 = vrot.slane %v973, 2
        %v1004 = vsel %vm482, %v1002, %v1003
        %v1005 = vrot.slane %v974, 2
        %v1006 = vsel %vm482, %v1003, %v1005
        %1007 = vrot.lane.b32.xlu0 %v989, 126
        %v1008 = vpop.permute.xlu0 %1007
        %1009 = vrot.lane.b32.xlu0 %v991, 126
        %v1010 = vpop.permute.xlu0 %1009
        %1011 = vrot.lane.b32.xlu0 %v994, 126
        %v1012 = vpop.permute.xlu0 %1011
        %1013 = vrot.lane.b32.xlu0 %v996, 126
        %v1014 = vpop.permute.xlu0 %1013
        %1015 = vrot.lane.b32.xlu0 %v999, 126
        %v1016 = vpop.permute.xlu0 %1015
        %1017 = vrot.lane.b32.xlu0 %v1001, 126
        %v1018 = vpop.permute.xlu0 %1017
        %1019 = vrot.lane.b32.xlu0 %v1004, 126
        %v1020 = vpop.permute.xlu0 %1019
        %1021 = vrot.lane.b32.xlu0 %v1006, 126
        %v1022 = vpop.permute.xlu0 %1021
        %v1031 = vadd.f32 %v939, %v1008
        %v1032 = vadd.f32 %v940, %v1010
        %v1033 = vadd.f32 %v941, %v1012
        %v1034 = vadd.f32 %v942, %v1014
        %v1035 = vadd.f32 %v943, %v1016
        %v1036 = vadd.f32 %v944, %v1018
        %v1037 = vadd.f32 %v945, %v1020
        %v1038 = vadd.f32 %v946, %v1022
        %vm1039 = vcmask 130048
        %1040 = vst.msk [vmem:[%s200] sm:$0xff] %vm1039, %v1031
        %1041 = vst.msk [vmem:[%s200 + $0x8] sm:$0xff] %vm1039, %v1032
        %1042 = vst.msk [vmem:[%s200 + $0x10] sm:$0xff] %vm1039, %v1033
        %1043 = vst.msk [vmem:[%s200 + $0x18] sm:$0xff] %vm1039, %v1034
        %1044 = vst.msk [vmem:[%s200 + $0x20] sm:$0xff] %vm1039, %v1035
        %1045 = vst.msk [vmem:[%s200 + $0x28] sm:$0xff] %vm1039, %v1036
        %1046 = vst.msk [vmem:[%s200 + $0x30] sm:$0xff] %vm1039, %v1037
        %1047 = vst.msk [vmem:[%s200 + $0x38] sm:$0xff] %vm1039, %v1038
        %s1048 = sand.u32 %s96, 1
        %s1049 = scalar_lea.sflag [#allocation5], %s1048
        %s1050 = sand.u32 %s96, 1
        %s1051 = smul.addr %s1050, 64
        %s1052 = scalar_lea.vmem [#allocation8], %s1051
        // Predicated region
        $region37: #{tpu_custom_call.1} parent=27 // pred_check
          %p1053 = pneg %p106
        $region38: #{tpu_custom_call.1} parent=27 // pred_check_branch
          %1055 = sbr.rel (%p1053) target = $region40
        $region39: #{tpu_custom_call.1} parent=27 // pred_region
          %s1056 = smul.u32 4, %s25
          %s1058 = ssub.s32 1024, 1024
          %1059 = vsyncadd %s1049, %s1058
          %s1060 = smul.addr %s1056, 2
          %s1061 = smul.addr %s24, 8
          %s1062 = sadd.s32 %s1060, %s1061
          %s1063 = smul.addr %s1062, 128
          %s1064 = scalar_lea.hbm %s2, %s1063
          %s1065 = sshll.u32 %s1052, 4
          %s1066 = int_to_ptr.vmem [resolvable:$true] %s1065
          %1071 = dma.vmem_to_hbm [thread:$0]  %s1066, 1024, %s1064, %s1049, 128, 128, 8
        $region40: #{tpu_custom_call.1} parent=27 // pred_fallthru
          _
      $region28: #{tpu_custom_call.1} parent=5 // pred_fallthru
        _
      %p1072 = scmp.le.s32.totalorder 2, %s15
      // Predicated region
      $region41: #{tpu_custom_call.1} parent=5 // pred_check
        %p1073 = pneg %p1072
      $region42: #{tpu_custom_call.1} parent=5 // pred_check_branch
        %1075 = sbr.rel (%p1073) target = $region44
      $region43: #{tpu_custom_call.1} parent=5 // pred_region
        %s1076 = ssub.s32 %s15, 2
        // Predicated region
        $region45: #{tpu_custom_call.1} parent=43 // pred_check
          %p1077 = pneg %p112
        $region46: #{tpu_custom_call.1} parent=43 // pred_check_branch
          %1079 = sbr.rel (%p1077) target = $region48
        $region47: #{tpu_custom_call.1} parent=43 // pred_region
          %s1080 = sand.u32 %s97, 1
          %s1081 = scalar_lea.sflag [#allocation5], %s1080
          %s1082 = sand.u32 %s97, 1
          %s1083 = smul.addr %s1082, 64
          %s1084 = scalar_lea.vmem [#allocation8], %s1083
          %1085 = dma.done %s1081, 1024
        $region48: #{tpu_custom_call.1} parent=43 // pred_fallthru
          _
      $region44: #{tpu_custom_call.1} parent=5 // pred_fallthru
        _
    $region6: #{tpu_custom_call.1} parent=1 // loop_footer
      %s19 = sadd.s32 1, %s15
    $region7: #{tpu_custom_call.1} parent=1 // loop_footer_branch
      %14 = sbr.rel target = $region3
    $region8: #{tpu_custom_call.1} parent=1 // loop_exit
      _
    %1086 = vsyncpa [#allocation4], 1
    %s1087 = scalar_lea.sflag [#allocation4], 1
    %1088 = vsyncpa %s1087, 1
    %1089 = vsyncpa [#allocation7], 1
    %s1090 = scalar_lea.sflag [#allocation7], 1
    %1091 = vsyncpa %s1090, 1
    %1092 = vsyncpa [#allocation5], 1
    %s1093 = scalar_lea.sflag [#allocation5], 1
    %1094 = vsyncpa %s1093, 1

</llo_original>
